<compile_context>
chip_gen: v6e
topology: v6e:2x2x1
jax: 0.10.0
libtpu: 0.0.40
codegen_flags: <defaults>
</compile_context>

<pallas_src>
import math

import jax
import jax.numpy as jnp
from jax import lax
from jax.experimental import pallas as pl
from jax.experimental.pallas import tpu as pltpu

_LANES = 128


def _sum_log_pos(x):
    """sum(log(x), axis=0, keepdims=True) for positive x with fewer EUP logs.

    Multiplies up to 8 vreg-aligned sublane blocks together (VALU), then takes one
    log per surviving element (EUP) and sublane-sums.  Exact up to f32 rounding.
    Falls back to direct log+sum when there is no grouping opportunity (small N).
    """
    n = x.shape[0]
    acc = None
    r = 0
    while r < n:
        blocks = min(8, (n - r) // 8)
        if blocks >= 2:
            p = x[r:r + 8, :]
            for j in range(1, blocks):
                p = p * x[r + j * 8:r + (j + 1) * 8, :]
            part = jnp.sum(jnp.log(p), axis=0, keepdims=True)
            r += blocks * 8
        else:
            part = jnp.sum(jnp.log(x[r:n, :]), axis=0, keepdims=True)
            r = n
        acc = part if acc is None else acc + part
    return acc


def _lowrank_mdn_kernel(w_ref, mu_ref, d_ref, v_ref, yt_ref, yp_ref,
                        lp_ref, mse_ref):
    K, Nv, Bb = mu_ref.shape
    R = v_ref.shape[0]

    yt = yt_ref[...].astype(jnp.float32)      # (N, Bb) target at pred_len
    yp = yp_ref[...].astype(jnp.float32)      # (N, Bb) target at pred_len - 1

    log2pi = jnp.float32(math.log(2.0 * math.pi))
    eps = jnp.float32(1e-20)

    # --- Mixture weights: normalize once, hoisted above the component loop. ---
    w_all = w_ref[...].astype(jnp.float32)                 # (K, Bb), f32 DMA
    w_k = [w_all[k:k + 1, :] for k in range(K)]            # (1, Bb) each
    w_sum = w_k[0]
    for k in range(1, K):
        w_sum = w_sum + w_k[k]
    inv_wsum = 1.0 / w_sum
    probs = [w_k[k] * inv_wsum for k in range(K)]          # Categorical normalization
    log_probs = [jnp.log(probs[k]) for k in range(K)]

    z = []            # log(weight_k) + component log-prob, (1, Bb) each
    mix_mean = None   # running mixture mean accumulator, (N, Bb)
    for k in range(K):                        # K is tiny & static -> full unroll
        mu_k = mu_ref[k].astype(jnp.float32)  # (N, Bb)
        d_k = d_ref[k].astype(jnp.float32)    # (N, Bb)

        contrib = probs[k] * mu_k             # in-loop mixture-mean accumulation
        mix_mean = contrib if mix_mean is None else mix_mean + contrib

        diff = yt - mu_k
        # Exact reciprocal: dinv feeds both Mahalanobis and the capacitance matrix;
        # do NOT use an approximate reciprocal here.
        dinv = 1.0 / d_k
        wdiff = dinv * diff

        # Sublane reduces over N (axis 0) -> (1, Bb) rows.
        q1 = jnp.sum(diff * wdiff, axis=0, keepdims=True)
        logdet_D = _sum_log_pos(d_k)          # chunked-product log (fewer EUP ops)

        v_k = [v_ref[r, k].astype(jnp.float32) for r in range(R)]   # (N, Bb) each
        vdinv = [v_k[r] * dinv for r in range(R)]

        # t_r = V_r^T D^{-1} diff ;  C_rs = delta_rs + V_r^T D^{-1} V_s   ((1, Bb))
        t = [jnp.sum(vdinv[r] * diff, axis=0, keepdims=True) for r in range(R)]
        C = [[None] * R for _ in range(R)]
        for r in range(R):
            for s in range(r + 1):
                c = jnp.sum(vdinv[r] * v_k[s], axis=0, keepdims=True)
                if r == s:
                    c = c + 1.0
                C[r][s] = c
                C[s][r] = c

        # Unrolled Cholesky of the RxR capacitance matrix (elementwise over (1, Bb)).
        # Diagonal pivots clamped against fp32 cancellation (benign: C >= I);
        # logdet_C accumulates log(pivot) directly (== 2*log(sqrt(pivot))).
        L = [[None] * R for _ in range(R)]
        inv_ld = [None] * R
        logdet_C = jnp.zeros_like(q1)
        for i in range(R):
            for j in range(i + 1):
                acc = C[i][j]
                for p in range(j):
                    acc = acc - L[i][p] * L[j][p]
                if i == j:
                    acc = jnp.maximum(acc, eps)
                    logdet_C = logdet_C + jnp.log(acc)
                    inv_ld[i] = lax.rsqrt(acc)
                else:
                    L[i][j] = acc * inv_ld[j]

        # Forward substitution L u = t ;  q2 = u^T u = t^T C^{-1} t.
        u = [None] * R
        q2 = jnp.zeros_like(q1)
        for i in range(R):
            acc = t[i]
            for p in range(i):
                acc = acc - L[i][p] * u[p]
            u[i] = acc * inv_ld[i]
            q2 = q2 + u[i] * u[i]

        comp_lp = -0.5 * (jnp.float32(Nv) * log2pi + logdet_C + logdet_D + (q1 - q2))
        z.append(log_probs[k] + comp_lp)

    # --- Mixture log-prob: logsumexp over K as unrolled max/add chains. ---
    m = z[0]
    for k in range(1, K):
        m = jnp.maximum(m, z[k])
    sexp = jnp.exp(z[0] - m)
    for k in range(1, K):
        sexp = sexp + jnp.exp(z[k] - m)
    lp = m + jnp.log(sexp)                               # (1, Bb)

    # Per-batch MSE of the mixture mean against y[:, :, pred_len-1].
    se = mix_mean - yp
    mse_b = jnp.sum(se * se, axis=0, keepdims=True) * jnp.float32(1.0 / Nv)

    # Lane-dense row stores (no masked partial stores).
    lp_ref[...] = lp
    mse_ref[...] = mse_b


def _vmem_capacity_bytes():
    try:
        return int(pltpu.get_tpu_info().vmem_capacity_bytes)
    except Exception:
        return 64 << 20            # conservative: v7x per-TC physical VMEM


def _pick_block_b(batch_padded, per_lane_bytes, budget_bytes, min_steps=4):
    """Largest lane-aligned batch block that fits `budget_bytes` while keeping the
    grid at >= min_steps steps when possible (v7x 2-TC sharding, pipeline ramp)."""
    cands = [c for c in (1024, 512, 256, 128)
             if batch_padded % c == 0 and c * per_lane_bytes <= budget_bytes]
    if not cands:
        return _LANES
    for want in (min_steps, 2, 1):
        for c in cands:                 # largest first
            if batch_padded // c >= want:
                return c
    return cands[-1]


def lowrank_mdn_forward(features, y, *, pred_len=12, reg_coef=0.1):
    """Pallas implementation of LowRankMDNhead.forward -> (loss, nll, reg, mse)."""
    w = features["w"]      # (B, K, 1)
    mu = features["mu"]    # (B, K, N)
    D = features["D"]      # (B, K, N)
    V = features["V"]      # (B, K, N, R)
    rho = features["rho"]  # scalar

    B, K, N = mu.shape
    R = V.shape[-1]

    # Lane-dense relayout: batch on lanes, n_vars on sublanes, rank/component major.
    # bf16 DMA for the byte-heavy operands (V dominates); D and w stay f32.
    # TODO(synk): producer should emit these lane-dense bf16 layouts directly.
    w_t = jnp.transpose(jnp.squeeze(w, axis=-1), (1, 0))                    # (K, B) f32
    d_t = jnp.transpose(D, (1, 2, 0))                                       # (K, N, B) f32
    mu_t = jnp.transpose(mu.astype(jnp.bfloat16), (1, 2, 0))                # (K, N, B) bf16
    v_t = jnp.transpose(V.astype(jnp.bfloat16), (3, 1, 2, 0))               # (R, K, N, B) bf16
    y_t = jnp.transpose(y[:, :, pred_len].astype(jnp.bfloat16), (1, 0))     # (N, B) bf16
    y_p = jnp.transpose(y[:, :, pred_len - 1].astype(jnp.bfloat16), (1, 0)) # (N, B) bf16

    # Pad the batch (lane axis) to a multiple of 128 with benign values; padded
    # lanes are dropped before the batch means below.
    Bp = ((B + _LANES - 1) // _LANES) * _LANES
    pad = Bp - B
    if pad:
        w_t = jnp.pad(w_t, ((0, 0), (0, pad)), constant_values=1.0)
        d_t = jnp.pad(d_t, ((0, 0), (0, 0), (0, pad)), constant_values=1.0)
        mu_t = jnp.pad(mu_t, ((0, 0), (0, 0), (0, pad)))
        v_t = jnp.pad(v_t, ((0, 0), (0, 0), (0, 0), (0, pad)))
        y_t = jnp.pad(y_t, ((0, 0), (0, pad)))
        y_p = jnp.pad(y_p, ((0, 0), (0, pad)))

    # Honest per-lane footprint: double-buffered DMA tiles + in-kernel f32 temps.
    f32b, bf16b = 4, 2
    dma_per_lane = (K * f32b                  # w
                    + K * N * bf16b           # mu
                    + K * N * f32b            # D
                    + R * K * N * bf16b       # V
                    + 2 * N * bf16b           # y_t, y_p
                    + 2 * f32b)               # two (1, Bb) outputs
    tmp_per_lane = (2 * R + 8) * N * f32b + 64 * f32b
    per_lane_bytes = 2 * dma_per_lane + tmp_per_lane

    vmem_phys = _vmem_capacity_bytes()
    budget = min(vmem_phys // 2, 40 << 20)
    block_b = _pick_block_b(Bp, per_lane_bytes, budget)
    grid = (Bp // block_b,)
    vmem_limit = int(min(0.9 * vmem_phys,
                         max(block_b * per_lane_bytes + (4 << 20), 16 << 20)))

    lp_row, mse_row = pl.pallas_call(
        _lowrank_mdn_kernel,
        out_shape=(jax.ShapeDtypeStruct((1, Bp), jnp.float32),
                   jax.ShapeDtypeStruct((1, Bp), jnp.float32)),
        grid_spec=pltpu.PrefetchScalarGridSpec(
            num_scalar_prefetch=0,
            grid=grid,
            in_specs=[
                pl.BlockSpec((K, block_b), lambda i: (0, i)),
                pl.BlockSpec((K, N, block_b), lambda i: (0, 0, i)),
                pl.BlockSpec((K, N, block_b), lambda i: (0, 0, i)),
                pl.BlockSpec((R, K, N, block_b), lambda i: (0, 0, 0, i)),
                pl.BlockSpec((N, block_b), lambda i: (0, i)),
                pl.BlockSpec((N, block_b), lambda i: (0, i)),
            ],
            out_specs=(
                pl.BlockSpec((1, block_b), lambda i: (0, i)),
                pl.BlockSpec((1, block_b), lambda i: (0, i)),
            ),
        ),
        compiler_params=pltpu.CompilerParams(
            dimension_semantics=("parallel",),
            vmem_limit_bytes=vmem_limit,
            # Let XLA fuse the wrapper-side cast+transpose relayout into the
            # pallas_call inputs instead of materializing it in HBM.
            allow_input_fusion=[True] * 6,
        ),
    )(w_t, mu_t, d_t, v_t, y_t, y_p)

    # Trivial scalar glue outside the kernel; drop padded lanes before the means.
    lp_valid = lp_row[0, :B]
    mse_valid = mse_row[0, :B]
    nll_loss = -jnp.mean(lp_valid)
    mse_loss = jnp.mean(mse_valid)
    reg_loss = 0
    loss = rho * nll_loss + reg_loss * reg_coef
    return loss, nll_loss, reg_loss, mse_loss


def _reference_forward(features, y, *, pred_len=12):
    """Independent pure-JAX reference (dense covariance path)."""
    w = jnp.squeeze(features["w"], -1)
    mu, D, V, rho = features["mu"], features["D"], features["V"], features["rho"]
    B, K, N = mu.shape
    y_t = y[:, :, pred_len]
    y_p = y[:, :, pred_len - 1]

    sigma = jnp.einsum("bknr,bkmr->bknm", V, V) + jnp.eye(N) * D[..., None, :]
    diff = y_t[:, None, :] - mu
    sol = jnp.linalg.solve(sigma, diff[..., None])[..., 0]
    maha = jnp.sum(diff * sol, axis=-1)
    _, logdet = jnp.linalg.slogdet(sigma)
    comp_lp = -0.5 * (N * math.log(2 * math.pi) + logdet + maha)
    log_w = jnp.log(w) - jnp.log(jnp.sum(w, -1, keepdims=True))
    lp = jax.scipy.special.logsumexp(log_w + comp_lp, axis=-1)
    nll = -jnp.mean(lp)
    probs = w / jnp.sum(w, -1, keepdims=True)
    mix_mean = jnp.sum(probs[..., None] * mu, axis=1)
    mse = jnp.mean(jnp.mean((mix_mean - y_p) ** 2, axis=1))
    return rho * nll, nll, 0, mse


if __name__ == "__main__":
    # Small, MDN-head-consistent shapes.
    B, K, N, R = 4, 3, 8, 2          # batch, n_components, n_vars, n_rank
    pred_len, seq = 12, 16           # y needs seq > pred_len

    key = jax.random.PRNGKey(0)
    k1, k2, k3, k4, k5 = jax.random.split(key, 5)

    features = {
        "w": jax.nn.softplus(jax.random.normal(k1, (B, K, 1), jnp.float32)) + 0.1,
        "mu": jax.random.normal(k2, (B, K, N), jnp.float32),
        "D": jax.nn.softplus(jax.random.normal(k3, (B, K, N), jnp.float32)) + 0.1,
        "V": 0.3 * jax.random.normal(k4, (B, K, N, R), jnp.float32),
        "rho": jnp.float32(0.7),
    }
    y = jax.random.normal(k5, (B, N, seq), jnp.float32)

    loss, nll, reg, mse = lowrank_mdn_forward(features, y, pred_len=pred_len)
    jax.block_until_ready((loss, nll, mse))

    # Cross-check against an independent dense-covariance reference, fed the same
    # bf16-rounded V/mu/y the kernel DMAs (D and w stay f32 on both paths).
    feat_ref = dict(features)
    feat_ref["mu"] = features["mu"].astype(jnp.bfloat16).astype(jnp.float32)
    feat_ref["V"] = features["V"].astype(jnp.bfloat16).astype(jnp.float32)
    y_ref = y.astype(jnp.bfloat16).astype(jnp.float32)
    loss_r, nll_r, _, mse_r = _reference_forward(feat_ref, y_ref, pred_len=pred_len)
    assert jnp.allclose(loss, loss_r, rtol=1e-4, atol=1e-4), (loss, loss_r)
    assert jnp.allclose(nll, nll_r, rtol=1e-4, atol=1e-4), (nll, nll_r)
    assert jnp.allclose(mse, mse_r, rtol=1e-4, atol=1e-4), (mse, mse_r)

    # Mimic the PyTorch return signature (loss, nll.item(), reg_loss, mse.item()).
    result = (loss, float(nll), reg, float(mse))
    print("KERNEL_OK")
</pallas_src>

<mosaic_0001>
module attributes {stable_mosaic.version = 11 : i64} {
  func.func @_lowrank_mdn_kernel(%arg0: i32, %arg1: memref<3x128xf32, #tpu.memory_space<vmem>>, %arg2: memref<3x8x128xbf16, #tpu.memory_space<vmem>>, %arg3: memref<3x8x128xf32, #tpu.memory_space<vmem>>, %arg4: memref<2x3x8x128xbf16, #tpu.memory_space<vmem>>, %arg5: memref<8x128xbf16, #tpu.memory_space<vmem>>, %arg6: memref<8x128xbf16, #tpu.memory_space<vmem>>, %arg7: memref<1x128xf32, #tpu.memory_space<vmem>>, %arg8: memref<1x128xf32, #tpu.memory_space<vmem>>) attributes {dimension_semantics = [#tpu.dimension_semantics<parallel>], iteration_bounds = array<i64: 1>, scalar_prefetch = 0 : i64, scratch_operands = 0 : i64, tpu.core_type = #tpu.core_type<tc>, window_params = [{transform_indices = @transform_0, window_bounds = array<i64: 3, 128>}, {transform_indices = @transform_1, window_bounds = array<i64: 3, 8, 128>}, {transform_indices = @transform_2, window_bounds = array<i64: 3, 8, 128>}, {transform_indices = @transform_3, window_bounds = array<i64: 2, 3, 8, 128>}, {transform_indices = @transform_4, window_bounds = array<i64: 8, 128>}, {transform_indices = @transform_5, window_bounds = array<i64: 8, 128>}, {transform_indices = @transform_6, window_bounds = array<i64: 1, 128>}, {transform_indices = @transform_7, window_bounds = array<i64: 1, 128>}]} {
    %c0 = arith.constant 0 : index
    %c0_0 = arith.constant 0 : index
    %0 = vector.load %arg5[%c0, %c0_0] : memref<8x128xbf16, #tpu.memory_space<vmem>>, vector<8x128xbf16>
    %1 = arith.extf %0 : vector<8x128xbf16> to vector<8x128xf32>
    %c0_1 = arith.constant 0 : index
    %c0_2 = arith.constant 0 : index
    %2 = vector.load %arg6[%c0_1, %c0_2] : memref<8x128xbf16, #tpu.memory_space<vmem>>, vector<8x128xbf16>
    %3 = arith.extf %2 : vector<8x128xbf16> to vector<8x128xf32>
    %c0_3 = arith.constant 0 : index
    %c0_4 = arith.constant 0 : index
    %4 = vector.load %arg1[%c0_3, %c0_4] : memref<3x128xf32, #tpu.memory_space<vmem>>, vector<3x128xf32>
    %5 = vector.extract_strided_slice %4 {offsets = [0, 0], sizes = [1, 128], strides = [1, 1]} : vector<3x128xf32> to vector<1x128xf32>
    %6 = vector.extract_strided_slice %4 {offsets = [1, 0], sizes = [1, 128], strides = [1, 1]} : vector<3x128xf32> to vector<1x128xf32>
    %7 = vector.extract_strided_slice %4 {offsets = [2, 0], sizes = [1, 128], strides = [1, 1]} : vector<3x128xf32> to vector<1x128xf32>
    %8 = arith.addf %5, %6 : vector<1x128xf32>
    %9 = arith.addf %8, %7 : vector<1x128xf32>
    %cst = arith.constant 1.000000e+00 : f32
    %10 = vector.broadcast %cst : f32 to vector<1x128xf32>
    %11 = arith.divf %10, %9 : vector<1x128xf32>
    %12 = arith.mulf %5, %11 : vector<1x128xf32>
    %13 = arith.mulf %6, %11 : vector<1x128xf32>
    %14 = arith.mulf %7, %11 : vector<1x128xf32>
    %15 = math.log %12 : vector<1x128xf32>
    %16 = math.log %13 : vector<1x128xf32>
    %17 = math.log %14 : vector<1x128xf32>
    %c0_5 = arith.constant 0 : index
    %c0_6 = arith.constant 0 : index
    %c0_7 = arith.constant 0 : index
    %18 = vector.load %arg2[%c0_5, %c0_6, %c0_7] : memref<3x8x128xbf16, #tpu.memory_space<vmem>>, vector<1x8x128xbf16>
    %19 = vector.shape_cast %18 : vector<1x8x128xbf16> to vector<8x128xbf16>
    %20 = arith.extf %19 : vector<8x128xbf16> to vector<8x128xf32>
    %c0_8 = arith.constant 0 : index
    %c0_9 = arith.constant 0 : index
    %c0_10 = arith.constant 0 : index
    %21 = vector.load %arg3[%c0_8, %c0_9, %c0_10] : memref<3x8x128xf32, #tpu.memory_space<vmem>>, vector<1x8x128xf32>
    %22 = vector.shape_cast %21 : vector<1x8x128xf32> to vector<8x128xf32>
    %23 = vector.broadcast %12 : vector<1x128xf32> to vector<8x128xf32>
    %24 = arith.mulf %23, %20 : vector<8x128xf32>
    %25 = arith.subf %1, %20 : vector<8x128xf32>
    %cst_11 = arith.constant 1.000000e+00 : f32
    %26 = vector.broadcast %cst_11 : f32 to vector<8x128xf32>
    %27 = arith.divf %26, %22 : vector<8x128xf32>
    %28 = arith.mulf %27, %25 : vector<8x128xf32>
    %29 = arith.mulf %25, %28 : vector<8x128xf32>
    %cst_12 = arith.constant dense<0.000000e+00> : vector<128xf32>
    %30 = vector.multi_reduction <add>, %29, %cst_12 [0] : vector<8x128xf32> to vector<128xf32>
    %31 = vector.shape_cast %30 : vector<128xf32> to vector<1x128xf32>
    %32 = math.log %22 : vector<8x128xf32>
    %cst_13 = arith.constant dense<0.000000e+00> : vector<128xf32>
    %33 = vector.multi_reduction <add>, %32, %cst_13 [0] : vector<8x128xf32> to vector<128xf32>
    %34 = vector.shape_cast %33 : vector<128xf32> to vector<1x128xf32>
    %c0_14 = arith.constant 0 : index
    %c0_15 = arith.constant 0 : index
    %c0_16 = arith.constant 0 : index
    %c0_17 = arith.constant 0 : index
    %35 = vector.load %arg4[%c0_14, %c0_15, %c0_16, %c0_17] : memref<2x3x8x128xbf16, #tpu.memory_space<vmem>>, vector<1x1x8x128xbf16>
    %36 = vector.shape_cast %35 : vector<1x1x8x128xbf16> to vector<8x128xbf16>
    %37 = arith.extf %36 : vector<8x128xbf16> to vector<8x128xf32>
    %c1 = arith.constant 1 : index
    %c0_18 = arith.constant 0 : index
    %c0_19 = arith.constant 0 : index
    %c0_20 = arith.constant 0 : index
    %38 = vector.load %arg4[%c1, %c0_18, %c0_19, %c0_20] : memref<2x3x8x128xbf16, #tpu.memory_space<vmem>>, vector<1x1x8x128xbf16>
    %39 = vector.shape_cast %38 : vector<1x1x8x128xbf16> to vector<8x128xbf16>
    %40 = arith.extf %39 : vector<8x128xbf16> to vector<8x128xf32>
    %41 = arith.mulf %37, %27 : vector<8x128xf32>
    %42 = arith.mulf %40, %27 : vector<8x128xf32>
    %43 = arith.mulf %41, %25 : vector<8x128xf32>
    %cst_21 = arith.constant dense<0.000000e+00> : vector<128xf32>
    %44 = vector.multi_reduction <add>, %43, %cst_21 [0] : vector<8x128xf32> to vector<128xf32>
    %45 = vector.shape_cast %44 : vector<128xf32> to vector<1x128xf32>
    %46 = arith.mulf %42, %25 : vector<8x128xf32>
    %cst_22 = arith.constant dense<0.000000e+00> : vector<128xf32>
    %47 = vector.multi_reduction <add>, %46, %cst_22 [0] : vector<8x128xf32> to vector<128xf32>
    %48 = vector.shape_cast %47 : vector<128xf32> to vector<1x128xf32>
    %49 = arith.mulf %41, %37 : vector<8x128xf32>
    %cst_23 = arith.constant dense<0.000000e+00> : vector<128xf32>
    %50 = vector.multi_reduction <add>, %49, %cst_23 [0] : vector<8x128xf32> to vector<128xf32>
    %51 = vector.shape_cast %50 : vector<128xf32> to vector<1x128xf32>
    %cst_24 = arith.constant 1.000000e+00 : f32
    %52 = vector.broadcast %cst_24 : f32 to vector<1x128xf32>
    %53 = arith.addf %51, %52 : vector<1x128xf32>
    %54 = arith.mulf %42, %37 : vector<8x128xf32>
    %cst_25 = arith.constant dense<0.000000e+00> : vector<128xf32>
    %55 = vector.multi_reduction <add>, %54, %cst_25 [0] : vector<8x128xf32> to vector<128xf32>
    %56 = vector.shape_cast %55 : vector<128xf32> to vector<1x128xf32>
    %57 = arith.mulf %42, %40 : vector<8x128xf32>
    %cst_26 = arith.constant dense<0.000000e+00> : vector<128xf32>
    %58 = vector.multi_reduction <add>, %57, %cst_26 [0] : vector<8x128xf32> to vector<128xf32>
    %59 = vector.shape_cast %58 : vector<128xf32> to vector<1x128xf32>
    %cst_27 = arith.constant 1.000000e+00 : f32
    %60 = vector.broadcast %cst_27 : f32 to vector<1x128xf32>
    %61 = arith.addf %59, %60 : vector<1x128xf32>
    %cst_28 = arith.constant 0.000000e+00 : f32
    %62 = vector.broadcast %cst_28 : f32 to vector<1x128xf32>
    %cst_29 = arith.constant 9.99999968E-21 : f32
    %63 = vector.broadcast %cst_29 : f32 to vector<1x128xf32>
    %64 = arith.maximumf %53, %63 : vector<1x128xf32>
    %65 = math.log %64 : vector<1x128xf32>
    %66 = arith.addf %62, %65 : vector<1x128xf32>
    %67 = math.rsqrt %64 : vector<1x128xf32>
    %68 = arith.mulf %56, %67 : vector<1x128xf32>
    %69 = arith.mulf %68, %68 : vector<1x128xf32>
    %70 = arith.subf %61, %69 : vector<1x128xf32>
    %cst_30 = arith.constant 9.99999968E-21 : f32
    %71 = vector.broadcast %cst_30 : f32 to vector<1x128xf32>
    %72 = arith.maximumf %70, %71 : vector<1x128xf32>
    %73 = math.log %72 : vector<1x128xf32>
    %74 = arith.addf %66, %73 : vector<1x128xf32>
    %75 = math.rsqrt %72 : vector<1x128xf32>
    %cst_31 = arith.constant 0.000000e+00 : f32
    %76 = vector.broadcast %cst_31 : f32 to vector<1x128xf32>
    %77 = arith.mulf %45, %67 : vector<1x128xf32>
    %78 = arith.mulf %77, %77 : vector<1x128xf32>
    %79 = arith.addf %76, %78 : vector<1x128xf32>
    %80 = arith.mulf %68, %77 : vector<1x128xf32>
    %81 = arith.subf %48, %80 : vector<1x128xf32>
    %82 = arith.mulf %81, %75 : vector<1x128xf32>
    %83 = arith.mulf %82, %82 : vector<1x128xf32>
    %84 = arith.addf %79, %83 : vector<1x128xf32>
    %cst_32 = arith.constant 8.000000e+00 : f32
    %cst_33 = arith.constant 1.83787704 : f32
    %85 = arith.mulf %cst_32, %cst_33 : f32
    %86 = vector.broadcast %85 : f32 to vector<1x128xf32>
    %87 = arith.addf %86, %74 : vector<1x128xf32>
    %88 = arith.addf %87, %34 : vector<1x128xf32>
    %89 = arith.subf %31, %84 : vector<1x128xf32>
    %90 = arith.addf %88, %89 : vector<1x128xf32>
    %cst_34 = arith.constant -5.000000e-01 : f32
    %91 = vector.broadcast %cst_34 : f32 to vector<1x128xf32>
    %92 = arith.mulf %91, %90 : vector<1x128xf32>
    %93 = arith.addf %15, %92 : vector<1x128xf32>
    %c1_35 = arith.constant 1 : index
    %c0_36 = arith.constant 0 : index
    %c0_37 = arith.constant 0 : index
    %94 = vector.load %arg2[%c1_35, %c0_36, %c0_37] : memref<3x8x128xbf16, #tpu.memory_space<vmem>>, vector<1x8x128xbf16>
    %95 = vector.shape_cast %94 : vector<1x8x128xbf16> to vector<8x128xbf16>
    %96 = arith.extf %95 : vector<8x128xbf16> to vector<8x128xf32>
    %c1_38 = arith.constant 1 : index
    %c0_39 = arith.constant 0 : index
    %c0_40 = arith.constant 0 : index
    %97 = vector.load %arg3[%c1_38, %c0_39, %c0_40] : memref<3x8x128xf32, #tpu.memory_space<vmem>>, vector<1x8x128xf32>
    %98 = vector.shape_cast %97 : vector<1x8x128xf32> to vector<8x128xf32>
    %99 = vector.broadcast %13 : vector<1x128xf32> to vector<8x128xf32>
    %100 = arith.mulf %99, %96 : vector<8x128xf32>
    %101 = arith.addf %24, %100 : vector<8x128xf32>
    %102 = arith.subf %1, %96 : vector<8x128xf32>
    %cst_41 = arith.constant 1.000000e+00 : f32
    %103 = vector.broadcast %cst_41 : f32 to vector<8x128xf32>
    %104 = arith.divf %103, %98 : vector<8x128xf32>
    %105 = arith.mulf %104, %102 : vector<8x128xf32>
    %106 = arith.mulf %102, %105 : vector<8x128xf32>
    %cst_42 = arith.constant dense<0.000000e+00> : vector<128xf32>
    %107 = vector.multi_reduction <add>, %106, %cst_42 [0] : vector<8x128xf32> to vector<128xf32>
    %108 = vector.shape_cast %107 : vector<128xf32> to vector<1x128xf32>
    %109 = math.log %98 : vector<8x128xf32>
    %cst_43 = arith.constant dense<0.000000e+00> : vector<128xf32>
    %110 = vector.multi_reduction <add>, %109, %cst_43 [0] : vector<8x128xf32> to vector<128xf32>
    %111 = vector.shape_cast %110 : vector<128xf32> to vector<1x128xf32>
    %c0_44 = arith.constant 0 : index
    %c1_45 = arith.constant 1 : index
    %c0_46 = arith.constant 0 : index
    %c0_47 = arith.constant 0 : index
    %112 = vector.load %arg4[%c0_44, %c1_45, %c0_46, %c0_47] : memref<2x3x8x128xbf16, #tpu.memory_space<vmem>>, vector<1x1x8x128xbf16>
    %113 = vector.shape_cast %112 : vector<1x1x8x128xbf16> to vector<8x128xbf16>
    %114 = arith.extf %113 : vector<8x128xbf16> to vector<8x128xf32>
    %c1_48 = arith.constant 1 : index
    %c1_49 = arith.constant 1 : index
    %c0_50 = arith.constant 0 : index
    %c0_51 = arith.constant 0 : index
    %115 = vector.load %arg4[%c1_48, %c1_49, %c0_50, %c0_51] : memref<2x3x8x128xbf16, #tpu.memory_space<vmem>>, vector<1x1x8x128xbf16>
    %116 = vector.shape_cast %115 : vector<1x1x8x128xbf16> to vector<8x128xbf16>
    %117 = arith.extf %116 : vector<8x128xbf16> to vector<8x128xf32>
    %118 = arith.mulf %114, %104 : vector<8x128xf32>
    %119 = arith.mulf %117, %104 : vector<8x128xf32>
    %120 = arith.mulf %118, %102 : vector<8x128xf32>
    %cst_52 = arith.constant dense<0.000000e+00> : vector<128xf32>
    %121 = vector.multi_reduction <add>, %120, %cst_52 [0] : vector<8x128xf32> to vector<128xf32>
    %122 = vector.shape_cast %121 : vector<128xf32> to vector<1x128xf32>
    %123 = arith.mulf %119, %102 : vector<8x128xf32>
    %cst_53 = arith.constant dense<0.000000e+00> : vector<128xf32>
    %124 = vector.multi_reduction <add>, %123, %cst_53 [0] : vector<8x128xf32> to vector<128xf32>
    %125 = vector.shape_cast %124 : vector<128xf32> to vector<1x128xf32>
    %126 = arith.mulf %118, %114 : vector<8x128xf32>
    %cst_54 = arith.constant dense<0.000000e+00> : vector<128xf32>
    %127 = vector.multi_reduction <add>, %126, %cst_54 [0] : vector<8x128xf32> to vector<128xf32>
    %128 = vector.shape_cast %127 : vector<128xf32> to vector<1x128xf32>
    %cst_55 = arith.constant 1.000000e+00 : f32
    %129 = vector.broadcast %cst_55 : f32 to vector<1x128xf32>
    %130 = arith.addf %128, %129 : vector<1x128xf32>
    %131 = arith.mulf %119, %114 : vector<8x128xf32>
    %cst_56 = arith.constant dense<0.000000e+00> : vector<128xf32>
    %132 = vector.multi_reduction <add>, %131, %cst_56 [0] : vector<8x128xf32> to vector<128xf32>
    %133 = vector.shape_cast %132 : vector<128xf32> to vector<1x128xf32>
    %134 = arith.mulf %119, %117 : vector<8x128xf32>
    %cst_57 = arith.constant dense<0.000000e+00> : vector<128xf32>
    %135 = vector.multi_reduction <add>, %134, %cst_57 [0] : vector<8x128xf32> to vector<128xf32>
    %136 = vector.shape_cast %135 : vector<128xf32> to vector<1x128xf32>
    %cst_58 = arith.constant 1.000000e+00 : f32
    %137 = vector.broadcast %cst_58 : f32 to vector<1x128xf32>
    %138 = arith.addf %136, %137 : vector<1x128xf32>
    %cst_59 = arith.constant 0.000000e+00 : f32
    %139 = vector.broadcast %cst_59 : f32 to vector<1x128xf32>
    %cst_60 = arith.constant 9.99999968E-21 : f32
    %140 = vector.broadcast %cst_60 : f32 to vector<1x128xf32>
    %141 = arith.maximumf %130, %140 : vector<1x128xf32>
    %142 = math.log %141 : vector<1x128xf32>
    %143 = arith.addf %139, %142 : vector<1x128xf32>
    %144 = math.rsqrt %141 : vector<1x128xf32>
    %145 = arith.mulf %133, %144 : vector<1x128xf32>
    %146 = arith.mulf %145, %145 : vector<1x128xf32>
    %147 = arith.subf %138, %146 : vector<1x128xf32>
    %cst_61 = arith.constant 9.99999968E-21 : f32
    %148 = vector.broadcast %cst_61 : f32 to vector<1x128xf32>
    %149 = arith.maximumf %147, %148 : vector<1x128xf32>
    %150 = math.log %149 : vector<1x128xf32>
    %151 = arith.addf %143, %150 : vector<1x128xf32>
    %152 = math.rsqrt %149 : vector<1x128xf32>
    %cst_62 = arith.constant 0.000000e+00 : f32
    %153 = vector.broadcast %cst_62 : f32 to vector<1x128xf32>
    %154 = arith.mulf %122, %144 : vector<1x128xf32>
    %155 = arith.mulf %154, %154 : vector<1x128xf32>
    %156 = arith.addf %153, %155 : vector<1x128xf32>
    %157 = arith.mulf %145, %154 : vector<1x128xf32>
    %158 = arith.subf %125, %157 : vector<1x128xf32>
    %159 = arith.mulf %158, %152 : vector<1x128xf32>
    %160 = arith.mulf %159, %159 : vector<1x128xf32>
    %161 = arith.addf %156, %160 : vector<1x128xf32>
    %cst_63 = arith.constant 8.000000e+00 : f32
    %cst_64 = arith.constant 1.83787704 : f32
    %162 = arith.mulf %cst_63, %cst_64 : f32
    %163 = vector.broadcast %162 : f32 to vector<1x128xf32>
    %164 = arith.addf %163, %151 : vector<1x128xf32>
    %165 = arith.addf %164, %111 : vector<1x128xf32>
    %166 = arith.subf %108, %161 : vector<1x128xf32>
    %167 = arith.addf %165, %166 : vector<1x128xf32>
    %cst_65 = arith.constant -5.000000e-01 : f32
    %168 = vector.broadcast %cst_65 : f32 to vector<1x128xf32>
    %169 = arith.mulf %168, %167 : vector<1x128xf32>
    %170 = arith.addf %16, %169 : vector<1x128xf32>
    %c2 = arith.constant 2 : index
    %c0_66 = arith.constant 0 : index
    %c0_67 = arith.constant 0 : index
    %171 = vector.load %arg2[%c2, %c0_66, %c0_67] : memref<3x8x128xbf16, #tpu.memory_space<vmem>>, vector<1x8x128xbf16>
    %172 = vector.shape_cast %171 : vector<1x8x128xbf16> to vector<8x128xbf16>
    %173 = arith.extf %172 : vector<8x128xbf16> to vector<8x128xf32>
    %c2_68 = arith.constant 2 : index
    %c0_69 = arith.constant 0 : index
    %c0_70 = arith.constant 0 : index
    %174 = vector.load %arg3[%c2_68, %c0_69, %c0_70] : memref<3x8x128xf32, #tpu.memory_space<vmem>>, vector<1x8x128xf32>
    %175 = vector.shape_cast %174 : vector<1x8x128xf32> to vector<8x128xf32>
    %176 = vector.broadcast %14 : vector<1x128xf32> to vector<8x128xf32>
    %177 = arith.mulf %176, %173 : vector<8x128xf32>
    %178 = arith.addf %101, %177 : vector<8x128xf32>
    %179 = arith.subf %1, %173 : vector<8x128xf32>
    %cst_71 = arith.constant 1.000000e+00 : f32
    %180 = vector.broadcast %cst_71 : f32 to vector<8x128xf32>
    %181 = arith.divf %180, %175 : vector<8x128xf32>
    %182 = arith.mulf %181, %179 : vector<8x128xf32>
    %183 = arith.mulf %179, %182 : vector<8x128xf32>
    %cst_72 = arith.constant dense<0.000000e+00> : vector<128xf32>
    %184 = vector.multi_reduction <add>, %183, %cst_72 [0] : vector<8x128xf32> to vector<128xf32>
    %185 = vector.shape_cast %184 : vector<128xf32> to vector<1x128xf32>
    %186 = math.log %175 : vector<8x128xf32>
    %cst_73 = arith.constant dense<0.000000e+00> : vector<128xf32>
    %187 = vector.multi_reduction <add>, %186, %cst_73 [0] : vector<8x128xf32> to vector<128xf32>
    %188 = vector.shape_cast %187 : vector<128xf32> to vector<1x128xf32>
    %c0_74 = arith.constant 0 : index
    %c2_75 = arith.constant 2 : index
    %c0_76 = arith.constant 0 : index
    %c0_77 = arith.constant 0 : index
    %189 = vector.load %arg4[%c0_74, %c2_75, %c0_76, %c0_77] : memref<2x3x8x128xbf16, #tpu.memory_space<vmem>>, vector<1x1x8x128xbf16>
    %190 = vector.shape_cast %189 : vector<1x1x8x128xbf16> to vector<8x128xbf16>
    %191 = arith.extf %190 : vector<8x128xbf16> to vector<8x128xf32>
    %c1_78 = arith.constant 1 : index
    %c2_79 = arith.constant 2 : index
    %c0_80 = arith.constant 0 : index
    %c0_81 = arith.constant 0 : index
    %192 = vector.load %arg4[%c1_78, %c2_79, %c0_80, %c0_81] : memref<2x3x8x128xbf16, #tpu.memory_space<vmem>>, vector<1x1x8x128xbf16>
    %193 = vector.shape_cast %192 : vector<1x1x8x128xbf16> to vector<8x128xbf16>
    %194 = arith.extf %193 : vector<8x128xbf16> to vector<8x128xf32>
    %195 = arith.mulf %191, %181 : vector<8x128xf32>
    %196 = arith.mulf %194, %181 : vector<8x128xf32>
    %197 = arith.mulf %195, %179 : vector<8x128xf32>
    %cst_82 = arith.constant dense<0.000000e+00> : vector<128xf32>
    %198 = vector.multi_reduction <add>, %197, %cst_82 [0] : vector<8x128xf32> to vector<128xf32>
    %199 = vector.shape_cast %198 : vector<128xf32> to vector<1x128xf32>
    %200 = arith.mulf %196, %179 : vector<8x128xf32>
    %cst_83 = arith.constant dense<0.000000e+00> : vector<128xf32>
    %201 = vector.multi_reduction <add>, %200, %cst_83 [0] : vector<8x128xf32> to vector<128xf32>
    %202 = vector.shape_cast %201 : vector<128xf32> to vector<1x128xf32>
    %203 = arith.mulf %195, %191 : vector<8x128xf32>
    %cst_84 = arith.constant dense<0.000000e+00> : vector<128xf32>
    %204 = vector.multi_reduction <add>, %203, %cst_84 [0] : vector<8x128xf32> to vector<128xf32>
    %205 = vector.shape_cast %204 : vector<128xf32> to vector<1x128xf32>
    %cst_85 = arith.constant 1.000000e+00 : f32
    %206 = vector.broadcast %cst_85 : f32 to vector<1x128xf32>
    %207 = arith.addf %205, %206 : vector<1x128xf32>
    %208 = arith.mulf %196, %191 : vector<8x128xf32>
    %cst_86 = arith.constant dense<0.000000e+00> : vector<128xf32>
    %209 = vector.multi_reduction <add>, %208, %cst_86 [0] : vector<8x128xf32> to vector<128xf32>
    %210 = vector.shape_cast %209 : vector<128xf32> to vector<1x128xf32>
    %211 = arith.mulf %196, %194 : vector<8x128xf32>
    %cst_87 = arith.constant dense<0.000000e+00> : vector<128xf32>
    %212 = vector.multi_reduction <add>, %211, %cst_87 [0] : vector<8x128xf32> to vector<128xf32>
    %213 = vector.shape_cast %212 : vector<128xf32> to vector<1x128xf32>
    %cst_88 = arith.constant 1.000000e+00 : f32
    %214 = vector.broadcast %cst_88 : f32 to vector<1x128xf32>
    %215 = arith.addf %213, %214 : vector<1x128xf32>
    %cst_89 = arith.constant 0.000000e+00 : f32
    %216 = vector.broadcast %cst_89 : f32 to vector<1x128xf32>
    %cst_90 = arith.constant 9.99999968E-21 : f32
    %217 = vector.broadcast %cst_90 : f32 to vector<1x128xf32>
    %218 = arith.maximumf %207, %217 : vector<1x128xf32>
    %219 = math.log %218 : vector<1x128xf32>
    %220 = arith.addf %216, %219 : vector<1x128xf32>
    %221 = math.rsqrt %218 : vector<1x128xf32>
    %222 = arith.mulf %210, %221 : vector<1x128xf32>
    %223 = arith.mulf %222, %222 : vector<1x128xf32>
    %224 = arith.subf %215, %223 : vector<1x128xf32>
    %cst_91 = arith.constant 9.99999968E-21 : f32
    %225 = vector.broadcast %cst_91 : f32 to vector<1x128xf32>
    %226 = arith.maximumf %224, %225 : vector<1x128xf32>
    %227 = math.log %226 : vector<1x128xf32>
    %228 = arith.addf %220, %227 : vector<1x128xf32>
    %229 = math.rsqrt %226 : vector<1x128xf32>
    %cst_92 = arith.constant 0.000000e+00 : f32
    %230 = vector.broadcast %cst_92 : f32 to vector<1x128xf32>
    %231 = arith.mulf %199, %221 : vector<1x128xf32>
    %232 = arith.mulf %231, %231 : vector<1x128xf32>
    %233 = arith.addf %230, %232 : vector<1x128xf32>
    %234 = arith.mulf %222, %231 : vector<1x128xf32>
    %235 = arith.subf %202, %234 : vector<1x128xf32>
    %236 = arith.mulf %235, %229 : vector<1x128xf32>
    %237 = arith.mulf %236, %236 : vector<1x128xf32>
    %238 = arith.addf %233, %237 : vector<1x128xf32>
    %cst_93 = arith.constant 8.000000e+00 : f32
    %cst_94 = arith.constant 1.83787704 : f32
    %239 = arith.mulf %cst_93, %cst_94 : f32
    %240 = vector.broadcast %239 : f32 to vector<1x128xf32>
    %241 = arith.addf %240, %228 : vector<1x128xf32>
    %242 = arith.addf %241, %188 : vector<1x128xf32>
    %243 = arith.subf %185, %238 : vector<1x128xf32>
    %244 = arith.addf %242, %243 : vector<1x128xf32>
    %cst_95 = arith.constant -5.000000e-01 : f32
    %245 = vector.broadcast %cst_95 : f32 to vector<1x128xf32>
    %246 = arith.mulf %245, %244 : vector<1x128xf32>
    %247 = arith.addf %17, %246 : vector<1x128xf32>
    %248 = arith.maximumf %93, %170 : vector<1x128xf32>
    %249 = arith.maximumf %248, %247 : vector<1x128xf32>
    %250 = arith.subf %93, %249 : vector<1x128xf32>
    %251 = math.exp %250 : vector<1x128xf32>
    %252 = arith.subf %170, %249 : vector<1x128xf32>
    %253 = math.exp %252 : vector<1x128xf32>
    %254 = arith.addf %251, %253 : vector<1x128xf32>
    %255 = arith.subf %247, %249 : vector<1x128xf32>
    %256 = math.exp %255 : vector<1x128xf32>
    %257 = arith.addf %254, %256 : vector<1x128xf32>
    %258 = math.log %257 : vector<1x128xf32>
    %259 = arith.addf %249, %258 : vector<1x128xf32>
    %260 = arith.subf %178, %3 : vector<8x128xf32>
    %261 = arith.mulf %260, %260 : vector<8x128xf32>
    %cst_96 = arith.constant dense<0.000000e+00> : vector<128xf32>
    %262 = vector.multi_reduction <add>, %261, %cst_96 [0] : vector<8x128xf32> to vector<128xf32>
    %263 = vector.shape_cast %262 : vector<128xf32> to vector<1x128xf32>
    %cst_97 = arith.constant 1.250000e-01 : f32
    %264 = vector.broadcast %cst_97 : f32 to vector<1x128xf32>
    %265 = arith.mulf %263, %264 : vector<1x128xf32>
    %c0_98 = arith.constant 0 : index
    %c0_99 = arith.constant 0 : index
    %266 = vector.load %arg7[%c0_98, %c0_99] : memref<1x128xf32, #tpu.memory_space<vmem>>, vector<1x128xf32>
    tpu.vector_store %arg7[%c0_98, %c0_99], %259 {strides = array<i32>} : memref<1x128xf32, #tpu.memory_space<vmem>>, vector<1x128xf32>,
    %c0_100 = arith.constant 0 : index
    %c0_101 = arith.constant 0 : index
    %267 = vector.load %arg8[%c0_100, %c0_101] : memref<1x128xf32, #tpu.memory_space<vmem>>, vector<1x128xf32>
    tpu.vector_store %arg8[%c0_100, %c0_101], %265 {strides = array<i32>} : memref<1x128xf32, #tpu.memory_space<vmem>>, vector<1x128xf32>,
    return
  }
  func.func @transform_0(%arg0: i32) -> (i32, i32) {
    %c0_i32 = arith.constant 0 : i32
    %c0_i32_0 = arith.constant 0 : i32
    return %c0_i32, %arg0 : i32, i32
  }
  func.func @transform_1(%arg0: i32) -> (i32, i32, i32) {
    %c0_i32 = arith.constant 0 : i32
    %c0_i32_0 = arith.constant 0 : i32
    %c0_i32_1 = arith.constant 0 : i32
    return %c0_i32, %c0_i32_0, %arg0 : i32, i32, i32
  }
  func.func @transform_2(%arg0: i32) -> (i32, i32, i32) {
    %c0_i32 = arith.constant 0 : i32
    %c0_i32_0 = arith.constant 0 : i32
    %c0_i32_1 = arith.constant 0 : i32
    return %c0_i32, %c0_i32_0, %arg0 : i32, i32, i32
  }
  func.func @transform_3(%arg0: i32) -> (i32, i32, i32, i32) {
    %c0_i32 = arith.constant 0 : i32
    %c0_i32_0 = arith.constant 0 : i32
    %c0_i32_1 = arith.constant 0 : i32
    %c0_i32_2 = arith.constant 0 : i32
    return %c0_i32, %c0_i32_0, %c0_i32_1, %arg0 : i32, i32, i32, i32
  }
  func.func @transform_4(%arg0: i32) -> (i32, i32) {
    %c0_i32 = arith.constant 0 : i32
    %c0_i32_0 = arith.constant 0 : i32
    return %c0_i32, %arg0 : i32, i32
  }
  func.func @transform_5(%arg0: i32) -> (i32, i32) {
    %c0_i32 = arith.constant 0 : i32
    %c0_i32_0 = arith.constant 0 : i32
    return %c0_i32, %arg0 : i32, i32
  }
  func.func @transform_6(%arg0: i32) -> (i32, i32) {
    %c0_i32 = arith.constant 0 : i32
    %c0_i32_0 = arith.constant 0 : i32
    return %c0_i32, %arg0 : i32, i32
  }
  func.func @transform_7(%arg0: i32) -> (i32, i32) {
    %c0_i32 = arith.constant 0 : i32
    %c0_i32_0 = arith.constant 0 : i32
    return %c0_i32, %arg0 : i32, i32
  }
}

</mosaic_0001>

<llo_original>
// kernel: tpu_custom_call.1
$region0: #{tpu_custom_call.1}
  #allocation0 [shape = 'u32[]', space=smem, size = 0x4, offset = 0x4, fixed_abs, tag = 'smem constant byte address 0x4 - core index']
  #allocation1 [shape = 'u32[144,128]{1,0:T(1,128)}', space=vmem, size = 0x12000, scoped, tag = 'internal scratch']
  %s0 = inlined_call_operand.hbm [shape: f32[3,128], index: 0, kind: input, shape index: {}]
  %s1 = inlined_call_operand.hbm [shape: bf16[3,8,128], index: 1, kind: input, shape index: {}]
  %s2 = inlined_call_operand.hbm [shape: f32[3,8,128], index: 2, kind: input, shape index: {}]
  %s3 = inlined_call_operand.hbm [shape: bf16[2,3,8,128], index: 3, kind: input, shape index: {}]
  %s4 = inlined_call_operand.vmem [shape: bf16[8,128], index: 4, kind: input, shape index: {}]
  %s5 = inlined_call_operand.vmem [shape: bf16[8,128], index: 5, kind: input, shape index: {}]
  %s6 = inlined_call_operand.hbm [shape: f32[1,128], index: 6, kind: output, shape index: {0}]
  %s7 = inlined_call_operand.hbm [shape: f32[1,128], index: 7, kind: output, shape index: {1}]
  %8 = xla_tuple %s6, %s7
  %s9 = sld [smem:[#allocation0]]
  $region58: #{tpu_custom_call.1} parent=0
    _
  %s11 = ssub.s32 1, %s9
  %s12 = scalar_select 0, %s11, %s9
  $region1: #{tpu_custom_call.1} parent=0
    #allocation2 [shape = 'u8[2048]{0}', space=vmem, size = 0x800, scoped, tag = 'input window, operand 0, single buffered']
    #allocation3 [shape = 's32[1]{0}', space=sflag, size = 0x4, scoped, tag = 'scoped memory for tpu_custom_call.1']
    #allocation4 [shape = 's32[1]{0}', space=sflag, size = 0x4, scoped, tag = 'scoped memory for tpu_custom_call.1']
    #allocation5 [shape = 'u8[6144]{0}', space=vmem, size = 0x1800, scoped, tag = 'input window, operand 1, single buffered']
    #allocation6 [shape = 's32[1]{0}', space=sflag, size = 0x4, scoped, tag = 'scoped memory for tpu_custom_call.1']
    #allocation7 [shape = 'u8[12288]{0}', space=vmem, size = 0x3000, scoped, tag = 'input window, operand 2, single buffered']
    #allocation8 [shape = 'u8[12288]{0}', space=vmem, size = 0x3000, scoped, tag = 'input window, operand 3, single buffered']
    #allocation9 [shape = 's32[1]{0}', space=sflag, size = 0x4, scoped, tag = 'scoped memory for tpu_custom_call.1']
    #allocation10 [shape = 'u8[512]{0}', space=vmem, size = 0x400, scoped, tag = 'output window, operand 0, single buffered']
    #allocation11 [shape = 'u8[512]{0}', space=vmem, size = 0x400, scoped, tag = 'output window, operand 1, single buffered']
    #allocation12 [shape = 's32[1]{0}', space=sflag, size = 0x4, scoped, tag = 'scoped memory for tpu_custom_call.1']
    %13 = vsyncpa [#allocation3], 0
    %14 = vsyncpa [#allocation6], 0
    %15 = vsyncpa [#allocation9], 0
    %16 = vsyncpa [#allocation4], 0
    %17 = vsyncpa [#allocation12], 0
    // Predicated region
    $region2: #{tpu_custom_call.1} parent=1 // pred_check
      _
    $region3: #{tpu_custom_call.1} parent=1 // pred_check_branch
      %19 = sbr.rel (0) target = $region5
    $region4: #{tpu_custom_call.1} parent=1 // pred_region
      %s21 = ssub.s32 64, 64
      %22 = vsyncadd [#allocation3], %s21
      %s24 = sshll.u32 [#allocation2], 4
      %s25 = int_to_ptr.vmem [resolvable:$true] %s24
      %27 = dma.hbm_to_vmem [thread:$0]  %s0, 64, %s25, [#allocation3]
    $region5: #{tpu_custom_call.1} parent=1 // pred_fallthru
      _
    // Predicated region
    $region6: #{tpu_custom_call.1} parent=1 // pred_check
      _
    $region7: #{tpu_custom_call.1} parent=1 // pred_check_branch
      %29 = sbr.rel (0) target = $region9
    $region8: #{tpu_custom_call.1} parent=1 // pred_region
      %s31 = ssub.s32 192, 192
      %32 = vsyncadd [#allocation6], %s31
      %s33 = sshll.u32 [#allocation5], 4
      %s34 = int_to_ptr.vmem [resolvable:$true] %s33
      %39 = dma.hbm_to_vmem [thread:$0]  %s1, 192, %s34, [#allocation6], 64, 64, 4
    $region9: #{tpu_custom_call.1} parent=1 // pred_fallthru
      _
    // Predicated region
    $region10: #{tpu_custom_call.1} parent=1 // pred_check
      _
    $region11: #{tpu_custom_call.1} parent=1 // pred_check_branch
      %41 = sbr.rel (0) target = $region13
    $region12: #{tpu_custom_call.1} parent=1 // pred_region
      %s43 = ssub.s32 384, 384
      %44 = vsyncadd [#allocation6], %s43
      %s45 = sshll.u32 [#allocation7], 4
      %s46 = int_to_ptr.vmem [resolvable:$true] %s45
      %51 = dma.hbm_to_vmem [thread:$0]  %s2, 384, %s46, [#allocation6], 128, 128, 8
    $region13: #{tpu_custom_call.1} parent=1 // pred_fallthru
      _
    // Predicated region
    $region14: #{tpu_custom_call.1} parent=1 // pred_check
      _
    $region15: #{tpu_custom_call.1} parent=1 // pred_check_branch
      %53 = sbr.rel (0) target = $region17
    $region16: #{tpu_custom_call.1} parent=1 // pred_region
      %s55 = ssub.s32 384, 384
      %56 = vsyncadd [#allocation9], %s55
      %s57 = sshll.u32 [#allocation8], 4
      %s58 = int_to_ptr.vmem [resolvable:$true] %s57
      %63 = dma.hbm_to_vmem [thread:$0]  %s3, 384, %s58, [#allocation9], 64, 64, 4
    $region17: #{tpu_custom_call.1} parent=1 // pred_fallthru
      _
    // Predicated region
    $region18: #{tpu_custom_call.1} parent=1 // pred_check
      _
    $region19: #{tpu_custom_call.1} parent=1 // pred_check_branch
      %65 = sbr.rel (0) target = $region21
    $region20: #{tpu_custom_call.1} parent=1 // pred_region
      _
    $region21: #{tpu_custom_call.1} parent=1 // pred_fallthru
      _
    // Predicated region
    $region22: #{tpu_custom_call.1} parent=1 // pred_check
      _
    $region23: #{tpu_custom_call.1} parent=1 // pred_check_branch
      %67 = sbr.rel (0) target = $region25
    $region24: #{tpu_custom_call.1} parent=1 // pred_region
      _
    $region25: #{tpu_custom_call.1} parent=1 // pred_fallthru
      _
    // Predicated region
    $region26: #{tpu_custom_call.1} parent=1 // pred_check
      _
    $region27: #{tpu_custom_call.1} parent=1 // pred_check_branch
      %69 = sbr.rel (0) target = $region29
    $region28: #{tpu_custom_call.1} parent=1 // pred_region
      %70 = dma.done [#allocation3], 64
    $region29: #{tpu_custom_call.1} parent=1 // pred_fallthru
      _
    // Predicated region
    $region30: #{tpu_custom_call.1} parent=1 // pred_check
      _
    $region31: #{tpu_custom_call.1} parent=1 // pred_check_branch
      %72 = sbr.rel (0) target = $region33
    $region32: #{tpu_custom_call.1} parent=1 // pred_region
      %73 = dma.done [#allocation6], 192
    $region33: #{tpu_custom_call.1} parent=1 // pred_fallthru
      _
    // Predicated region
    $region34: #{tpu_custom_call.1} parent=1 // pred_check
      _
    $region35: #{tpu_custom_call.1} parent=1 // pred_check_branch
      %75 = sbr.rel (0) target = $region37
    $region36: #{tpu_custom_call.1} parent=1 // pred_region
      %76 = dma.done [#allocation6], 384
    $region37: #{tpu_custom_call.1} parent=1 // pred_fallthru
      _
    // Predicated region
    $region38: #{tpu_custom_call.1} parent=1 // pred_check
      _
    $region39: #{tpu_custom_call.1} parent=1 // pred_check_branch
      %78 = sbr.rel (0) target = $region41
    $region40: #{tpu_custom_call.1} parent=1 // pred_region
      %79 = dma.done [#allocation9], 384
    $region41: #{tpu_custom_call.1} parent=1 // pred_fallthru
      _
    %v80 = vld [vmem:[%s4] sm:$0xf]
    %v81 = vunpack.c.l.bf16 %v80
    %v82 = vld [vmem:[%s5] sm:$0xf]
    %v83 = vunpack.c.l.bf16 %v82
    %v84 = vld [vmem:[#allocation2] sm:$0x7]
    %v86 = vrot.slane %v84, 1
    %v88 = vadd.f32 %v84, %v86
    %v89 = vrot.slane %v84, 2
    %v91 = vadd.f32 %v88, %v89
    %v92 = vrcp.pop %v91
    %v93 = vmul.f32 1.0, %v92
    %v94 = vmul.f32 %v84, %v93
    %v96 = vrot.slane %v93, 7
    %v98 = vmul.f32 %v84, %v96
    %v99 = vrot.slane %v93, 6
    %v101 = vmul.f32 %v84, %v99
    %v102 = vlog2.pop %v94
    %v103 = vmul.f32 %v102, 0.6931472
    %v104 = vlog2.pop %v98
    %v105 = vmul.f32 %v104, 0.6931472
    %v106 = vlog2.pop %v101
    %v107 = vmul.f32 %v106, 0.6931472
    %v108 = vld [vmem:[#allocation5] sm:$0xf]
    %v109 = vunpack.c.l.bf16 %v108
    %v110 = vld [vmem:[#allocation7] sm:$0xff]
    %v111 = vlaneseq
    %v112 = vshrl.u32 %v111, 7
    %v113 = vsub.s32 0, %v112
    %v114 = vrot.slane %v94, %v113
    %v115 = vmul.f32 %v114, %v109
    %v116 = vsub.f32 %v81, %v109
    %v117 = vrcp.pop %v110
    %v118 = vmul.f32 1.0, %v117
    %v119 = vmul.f32 %v118, %v116
    %v120 = vmul.f32 %v116, %v119
    %v121 = vrot.slane %v120, 4
    %v122 = vadd.f32 %v120, %v121
    %v123 = vrot.slane %v122, 2
    %v124 = vadd.f32 %v122, %v123
    %v125 = vrot.slane %v124, 1
    %v126 = vadd.f32 %v124, %v125
    %v127 = vlog2.pop %v110
    %v128 = vmul.f32 %v127, 0.6931472
    %v129 = vrot.slane %v128, 4
    %v130 = vadd.f32 %v128, %v129
    %v131 = vrot.slane %v130, 2
    %v132 = vadd.f32 %v130, %v131
    %v133 = vrot.slane %v132, 1
    %v134 = vadd.f32 %v132, %v133
    %v135 = vld [vmem:[#allocation8] sm:$0xf]
    %v136 = vunpack.c.l.bf16 %v135
    %s137 = scalar_lea.vmem [#allocation8], 12
    %v138 = vld [vmem:[%s137] sm:$0xf]
    %v139 = vunpack.c.l.bf16 %v138
    %v140 = vmul.f32 %v136, %v118
    %v141 = vmul.f32 %v139, %v118
    %v142 = vmul.f32 %v140, %v116
    %v143 = vrot.slane %v142, 4
    %v144 = vadd.f32 %v142, %v143
    %v145 = vrot.slane %v144, 2
    %v146 = vadd.f32 %v144, %v145
    %v147 = vrot.slane %v146, 1
    %v148 = vadd.f32 %v146, %v147
    %v149 = vmul.f32 %v141, %v116
    %v150 = vrot.slane %v149, 4
    %v151 = vadd.f32 %v149, %v150
    %v152 = vrot.slane %v151, 2
    %v153 = vadd.f32 %v151, %v152
    %v154 = vrot.slane %v153, 1
    %v155 = vadd.f32 %v153, %v154
    %v156 = vmul.f32 %v140, %v136
    %v157 = vrot.slane %v156, 4
    %v158 = vadd.f32 %v156, %v157
    %v159 = vrot.slane %v158, 2
    %v160 = vadd.f32 %v158, %v159
    %v161 = vrot.slane %v160, 1
    %v162 = vadd.f32 %v160, %v161
    %v163 = vadd.f32 %v162, 1.0
    %v164 = vmul.f32 %v141, %v136
    %v165 = vrot.slane %v164, 4
    %v166 = vadd.f32 %v164, %v165
    %v167 = vrot.slane %v166, 2
    %v168 = vadd.f32 %v166, %v167
    %v169 = vrot.slane %v168, 1
    %v170 = vadd.f32 %v168, %v169
    %v171 = vmul.f32 %v141, %v139
    %v172 = vrot.slane %v171, 4
    %v173 = vadd.f32 %v171, %v172
    %v174 = vrot.slane %v173, 2
    %v175 = vadd.f32 %v173, %v174
    %v176 = vrot.slane %v175, 1
    %v177 = vadd.f32 %v175, %v176
    %v178 = vadd.f32 %v177, 1.0
    %v179 = vmax.f32 %v163, 1e-20
    %v180 = vlog2.pop %v179
    %v181 = vmul.f32 %v180, 0.6931472
    %v182 = vadd.f32 %v181, 0.0
    %v183 = vrsqrt.pop %v179
    %v184 = vmul.f32 %v170, %v183
    %v185 = vmul.f32 %v184, %v184
    %v186 = vsub.f32 %v178, %v185
    %v187 = vmax.f32 %v186, 1e-20
    %v188 = vlog2.pop %v187
    %v189 = vmul.f32 %v188, 0.6931472
    %v190 = vadd.f32 %v182, %v189
    %v191 = vrsqrt.pop %v187
    %v192 = vmul.f32 %v148, %v183
    %v193 = vmul.f32 %v192, %v192
    %v194 = vadd.f32 %v193, 0.0
    %v195 = vmul.f32 %v184, %v192
    %v196 = vsub.f32 %v155, %v195
    %v197 = vmul.f32 %v196, %v191
    %v198 = vmul.f32 %v197, %v197
    %v199 = vadd.f32 %v194, %v198
    %v200 = vadd.f32 %v190, 14.703016
    %v201 = vadd.f32 %v200, %v134
    %v202 = vsub.f32 %v126, %v199
    %v203 = vadd.f32 %v201, %v202
    %v204 = vmul.f32 %v203, -0.5
    %v205 = vadd.f32 %v103, %v204
    %s206 = scalar_lea.vmem [#allocation5], 4
    %v207 = vld [vmem:[%s206] sm:$0xf]
    %v208 = vunpack.c.l.bf16 %v207
    %s209 = scalar_lea.vmem [#allocation7], 8
    %v210 = vld [vmem:[%s209] sm:$0xff]
    %v211 = vlaneseq
    %v212 = vshrl.u32 %v211, 7
    %v213 = vsub.s32 1, %v212
    %v214 = vrot.slane %v98, %v213
    %v215 = vmul.f32 %v214, %v208
    %v216 = vadd.f32 %v115, %v215
    %v217 = vsub.f32 %v81, %v208
    %v218 = vrcp.pop %v210
    %v219 = vmul.f32 1.0, %v218
    %v220 = vmul.f32 %v219, %v217
    %v221 = vmul.f32 %v217, %v220
    %v222 = vrot.slane %v221, 4
    %v223 = vadd.f32 %v221, %v222
    %v224 = vrot.slane %v223, 2
    %v225 = vadd.f32 %v223, %v224
    %v226 = vrot.slane %v225, 1
    %v227 = vadd.f32 %v225, %v226
    %v228 = vlog2.pop %v210
    %v229 = vmul.f32 %v228, 0.6931472
    %v230 = vrot.slane %v229, 4
    %v231 = vadd.f32 %v229, %v230
    %v232 = vrot.slane %v231, 2
    %v233 = vadd.f32 %v231, %v232
    %v234 = vrot.slane %v233, 1
    %v235 = vadd.f32 %v233, %v234
    %s236 = scalar_lea.vmem [#allocation8], 4
    %v237 = vld [vmem:[%s236] sm:$0xf]
    %v238 = vunpack.c.l.bf16 %v237
    %s239 = scalar_lea.vmem [#allocation8], 16
    %v240 = vld [vmem:[%s239] sm:$0xf]
    %v241 = vunpack.c.l.bf16 %v240
    %v242 = vmul.f32 %v238, %v219
    %v243 = vmul.f32 %v241, %v219
    %v244 = vmul.f32 %v242, %v217
    %v245 = vrot.slane %v244, 4
    %v246 = vadd.f32 %v244, %v245
    %v247 = vrot.slane %v246, 2
    %v248 = vadd.f32 %v246, %v247
    %v249 = vrot.slane %v248, 1
    %v250 = vadd.f32 %v248, %v249
    %v251 = vmul.f32 %v243, %v217
    %v252 = vrot.slane %v251, 4
    %v253 = vadd.f32 %v251, %v252
    %v254 = vrot.slane %v253, 2
    %v255 = vadd.f32 %v253, %v254
    %v256 = vrot.slane %v255, 1
    %v257 = vadd.f32 %v255, %v256
    %v258 = vmul.f32 %v242, %v238
    %v259 = vrot.slane %v258, 4
    %v260 = vadd.f32 %v258, %v259
    %v261 = vrot.slane %v260, 2
    %v262 = vadd.f32 %v260, %v261
    %v263 = vrot.slane %v262, 1
    %v264 = vadd.f32 %v262, %v263
    %v265 = vadd.f32 %v264, 1.0
    %v266 = vmul.f32 %v243, %v238
    %v267 = vrot.slane %v266, 4
    %v268 = vadd.f32 %v266, %v267
    %v269 = vrot.slane %v268, 2
    %v270 = vadd.f32 %v268, %v269
    %v271 = vrot.slane %v270, 1
    %v272 = vadd.f32 %v270, %v271
    %v273 = vmul.f32 %v243, %v241
    %v274 = vrot.slane %v273, 4
    %v275 = vadd.f32 %v273, %v274
    %v276 = vrot.slane %v275, 2
    %v277 = vadd.f32 %v275, %v276
    %v278 = vrot.slane %v277, 1
    %v279 = vadd.f32 %v277, %v278
    %v280 = vadd.f32 %v279, 1.0
    %v281 = vmax.f32 %v265, 1e-20
    %v282 = vlog2.pop %v281
    %v283 = vmul.f32 %v282, 0.6931472
    %v284 = vadd.f32 %v283, 0.0
    %v285 = vrsqrt.pop %v281
    %v286 = vmul.f32 %v272, %v285
    %v287 = vmul.f32 %v286, %v286
    %v288 = vsub.f32 %v280, %v287
    %v289 = vmax.f32 %v288, 1e-20
    %v290 = vlog2.pop %v289
    %v291 = vmul.f32 %v290, 0.6931472
    %v292 = vadd.f32 %v284, %v291
    %v293 = vrsqrt.pop %v289
    %v294 = vmul.f32 %v250, %v285
    %v295 = vmul.f32 %v294, %v294
    %v296 = vadd.f32 %v295, 0.0
    %v297 = vmul.f32 %v286, %v294
    %v298 = vsub.f32 %v257, %v297
    %v299 = vmul.f32 %v298, %v293
    %v300 = vmul.f32 %v299, %v299
    %v301 = vadd.f32 %v296, %v300
    %v302 = vadd.f32 %v292, 14.703016
    %v303 = vadd.f32 %v302, %v235
    %v304 = vsub.f32 %v227, %v301
    %v305 = vadd.f32 %v303, %v304
    %v306 = vmul.f32 %v305, -0.5
    %v307 = vadd.f32 %v105, %v306
    %s308 = scalar_lea.vmem [#allocation5], 8
    %v309 = vld [vmem:[%s308] sm:$0xf]
    %v310 = vunpack.c.l.bf16 %v309
    %s311 = scalar_lea.vmem [#allocation7], 16
    %v312 = vld [vmem:[%s311] sm:$0xff]
    %v313 = vlaneseq
    %v314 = vshrl.u32 %v313, 7
    %v315 = vsub.s32 2, %v314
    %v316 = vrot.slane %v101, %v315
    %v317 = vmul.f32 %v316, %v310
    %v318 = vadd.f32 %v216, %v317
    %v319 = vsub.f32 %v81, %v310
    %v320 = vrcp.pop %v312
    %v321 = vmul.f32 1.0, %v320
    %v322 = vmul.f32 %v321, %v319
    %v323 = vmul.f32 %v319, %v322
    %v324 = vrot.slane %v323, 4
    %v325 = vadd.f32 %v323, %v324
    %v326 = vrot.slane %v325, 2
    %v327 = vadd.f32 %v325, %v326
    %v328 = vrot.slane %v327, 1
    %v329 = vadd.f32 %v327, %v328
    %v330 = vlog2.pop %v312
    %v331 = vmul.f32 %v330, 0.6931472
    %v332 = vrot.slane %v331, 4
    %v333 = vadd.f32 %v331, %v332
    %v334 = vrot.slane %v333, 2
    %v335 = vadd.f32 %v333, %v334
    %v336 = vrot.slane %v335, 1
    %v337 = vadd.f32 %v335, %v336
    %s338 = scalar_lea.vmem [#allocation8], 8
    %v339 = vld [vmem:[%s338] sm:$0xf]
    %v340 = vunpack.c.l.bf16 %v339
    %s341 = scalar_lea.vmem [#allocation8], 20
    %v342 = vld [vmem:[%s341] sm:$0xf]
    %v343 = vunpack.c.l.bf16 %v342
    %v344 = vmul.f32 %v340, %v321
    %v345 = vmul.f32 %v343, %v321
    %v346 = vmul.f32 %v344, %v319
    %v347 = vrot.slane %v346, 4
    %v348 = vadd.f32 %v346, %v347
    %v349 = vrot.slane %v348, 2
    %v350 = vadd.f32 %v348, %v349
    %v351 = vrot.slane %v350, 1
    %v352 = vadd.f32 %v350, %v351
    %v353 = vmul.f32 %v345, %v319
    %v354 = vrot.slane %v353, 4
    %v355 = vadd.f32 %v353, %v354
    %v356 = vrot.slane %v355, 2
    %v357 = vadd.f32 %v355, %v356
    %v358 = vrot.slane %v357, 1
    %v359 = vadd.f32 %v357, %v358
    %v360 = vmul.f32 %v344, %v340
    %v361 = vrot.slane %v360, 4
    %v362 = vadd.f32 %v360, %v361
    %v363 = vrot.slane %v362, 2
    %v364 = vadd.f32 %v362, %v363
    %v365 = vrot.slane %v364, 1
    %v366 = vadd.f32 %v364, %v365
    %v367 = vadd.f32 %v366, 1.0
    %v368 = vmul.f32 %v345, %v340
    %v369 = vrot.slane %v368, 4
    %v370 = vadd.f32 %v368, %v369
    %v371 = vrot.slane %v370, 2
    %v372 = vadd.f32 %v370, %v371
    %v373 = vrot.slane %v372, 1
    %v374 = vadd.f32 %v372, %v373
    %v375 = vmul.f32 %v345, %v343
    %v376 = vrot.slane %v375, 4
    %v377 = vadd.f32 %v375, %v376
    %v378 = vrot.slane %v377, 2
    %v379 = vadd.f32 %v377, %v378
    %v380 = vrot.slane %v379, 1
    %v381 = vadd.f32 %v379, %v380
    %v382 = vadd.f32 %v381, 1.0
    %v383 = vmax.f32 %v367, 1e-20
    %v384 = vlog2.pop %v383
    %v385 = vmul.f32 %v384, 0.6931472
    %v386 = vadd.f32 %v385, 0.0
    %v387 = vrsqrt.pop %v383
    %v388 = vmul.f32 %v374, %v387
    %v389 = vmul.f32 %v388, %v388
    %v390 = vsub.f32 %v382, %v389
    %v391 = vmax.f32 %v390, 1e-20
    %v392 = vlog2.pop %v391
    %v393 = vmul.f32 %v392, 0.6931472
    %v394 = vadd.f32 %v386, %v393
    %v395 = vrsqrt.pop %v391
    %v396 = vmul.f32 %v352, %v387
    %v397 = vmul.f32 %v396, %v396
    %v398 = vadd.f32 %v397, 0.0
    %v399 = vmul.f32 %v388, %v396
    %v400 = vsub.f32 %v359, %v399
    %v401 = vmul.f32 %v400, %v395
    %v402 = vmul.f32 %v401, %v401
    %v403 = vadd.f32 %v398, %v402
    %v404 = vadd.f32 %v394, 14.703016
    %v405 = vadd.f32 %v404, %v337
    %v406 = vsub.f32 %v329, %v403
    %v407 = vadd.f32 %v405, %v406
    %v408 = vmul.f32 %v407, -0.5
    %v409 = vadd.f32 %v107, %v408
    %v411 = vrot.slane %v307, 1
    %v413 = vmax.f32 %v205, %v411
    %v415 = vrot.slane %v409, 2
    %v417 = vmax.f32 %v413, %v415
    %v418 = vsub.f32 %v205, %v417
    %v419 = vmul.f32 %v418, 1.442695
    %v420 = vpow.pop %v419
    %v422 = vrot.slane %v417, 7
    %v424 = vsub.f32 %v307, %v422
    %v425 = vmul.f32 %v424, 1.442695
    %v426 = vpow.pop %v425
    %v428 = vrot.slane %v426, 1
    %v430 = vadd.f32 %v420, %v428
    %v431 = vrot.slane %v417, 6
    %v433 = vsub.f32 %v409, %v431
    %v434 = vmul.f32 %v433, 1.442695
    %v435 = vpow.pop %v434
    %v437 = vrot.slane %v435, 2
    %v439 = vadd.f32 %v430, %v437
    %v440 = vlog2.pop %v439
    %v441 = vmul.f32 %v440, 0.6931472
    %v442 = vadd.f32 %v417, %v441
    %v443 = vsub.f32 %v318, %v83
    %v444 = vmul.f32 %v443, %v443
    %v445 = vrot.slane %v444, 4
    %v446 = vadd.f32 %v444, %v445
    %v447 = vrot.slane %v446, 2
    %v448 = vadd.f32 %v446, %v447
    %v449 = vrot.slane %v448, 1
    %v450 = vadd.f32 %v448, %v449
    %v451 = vmul.f32 %v450, 0.125
    %452 = vst [vmem:[#allocation10] sm:$0x1] %v442
    %453 = vst [vmem:[#allocation11] sm:$0x1] %v451
    // Predicated region
    $region42: #{tpu_custom_call.1} parent=1 // pred_check
      _
    $region43: #{tpu_custom_call.1} parent=1 // pred_check_branch
      %455 = sbr.rel (0) target = $region45
    $region44: #{tpu_custom_call.1} parent=1 // pred_region
      %s457 = ssub.s32 16, 16
      %458 = vsyncadd [#allocation4], %s457
      %s460 = sshll.u32 [#allocation10], 4
      %s461 = int_to_ptr.vmem [resolvable:$true] %s460
      %463 = dma.vmem_to_hbm [thread:$0]  %s461, 16, %s6, [#allocation4]
    $region45: #{tpu_custom_call.1} parent=1 // pred_fallthru
      _
    // Predicated region
    $region46: #{tpu_custom_call.1} parent=1 // pred_check
      _
    $region47: #{tpu_custom_call.1} parent=1 // pred_check_branch
      %465 = sbr.rel (0) target = $region49
    $region48: #{tpu_custom_call.1} parent=1 // pred_region
      %s467 = ssub.s32 16, 16
      %468 = vsyncadd [#allocation12], %s467
      %s470 = sshll.u32 [#allocation11], 4
      %s471 = int_to_ptr.vmem [resolvable:$true] %s470
      %473 = dma.vmem_to_hbm [thread:$0]  %s471, 16, %s7, [#allocation12]
    $region49: #{tpu_custom_call.1} parent=1 // pred_fallthru
      _
    // Predicated region
    $region50: #{tpu_custom_call.1} parent=1 // pred_check
      _
    $region51: #{tpu_custom_call.1} parent=1 // pred_check_branch
      %475 = sbr.rel (0) target = $region53
    $region52: #{tpu_custom_call.1} parent=1 // pred_region
      %476 = dma.done [#allocation4], 16
    $region53: #{tpu_custom_call.1} parent=1 // pred_fallthru
      _
    // Predicated region
    $region54: #{tpu_custom_call.1} parent=1 // pred_check
      _
    $region55: #{tpu_custom_call.1} parent=1 // pred_check_branch
      %478 = sbr.rel (0) target = $region57
    $region56: #{tpu_custom_call.1} parent=1 // pred_region
      %479 = dma.done [#allocation12], 16
    $region57: #{tpu_custom_call.1} parent=1 // pred_fallthru
      _
    %480 = vsyncpa [#allocation3], 1
    %481 = vsyncpa [#allocation6], 1
    %482 = vsyncpa [#allocation9], 1
    %483 = vsyncpa [#allocation4], 1
    %484 = vsyncpa [#allocation12], 1

</llo_original>
